<compile_context>
chip_gen: v6e
topology: v6e:2x2x1
jax: 0.10.0
libtpu: 0.0.40
codegen_flags: <defaults>
</compile_context>

<pallas_src>
import functools

import jax
import jax.numpy as jnp
from jax import lax
from jax.experimental import pallas as pl
from jax.experimental.pallas import tpu as pltpu

_LANES = 128
_SUBLANES = 8


def _round_up(x, m):
    return ((x + m - 1) // m) * m


def _focal_loss_kernel(preds_ref, labels_ref, out_ref, *,
                       gamma, from_logits, total, tile_rows,
                       tiles_per_part, needs_mask):
    """Per-tile focal-weighted BCE; vector-accumulates into a resident (8,128) block."""
    p_idx = pl.program_id(0)   # "parallel" axis (per-TensorCore partition)
    i = pl.program_id(1)       # "arbitrary" reduction axis within the partition

    @pl.when(i == 0)
    def _():
        out_ref[...] = jnp.zeros_like(out_ref)

    x = preds_ref[...].astype(jnp.float32)   # logits (or probs if not from_logits)
    y = labels_ref[...].astype(jnp.float32)

    # softplus(-|x|): computed ONCE, shared by log-sigmoid and BCE-with-logits.
    sp = jnp.log1p(jnp.exp(-jnp.abs(x)))

    if from_logits:
        p = jnp.exp(jnp.minimum(x, 0.0) - sp)   # sigmoid(x), numerically stable
    else:
        p = x

    p_t = y * p + (1.0 - y) * (1.0 - p)

    # binary_cross_entropy_with_logits(x, y), reduction='none':
    #   max(x, 0) - x*y + log1p(exp(-|x|))
    bce = jnp.maximum(x, 0.0) - x * y + sp

    # Focal weight specialized at trace time (gamma is a Python float).
    if gamma == 1.0:
        loss = bce                                   # (1 - p_t) ** 0 == 1
    else:
        loss = jnp.power(1.0 - p_t, 1.0 - gamma) * bce

    # Mask padded tail elements (only traced in when padding exists).
    if needs_mask:
        row_ids = lax.broadcasted_iota(jnp.int32, (tile_rows, _LANES), 0)
        lane_ids = lax.broadcasted_iota(jnp.int32, (tile_rows, _LANES), 1)
        tile_start = (p_idx * tiles_per_part + i) * tile_rows
        flat = (tile_start + row_ids) * _LANES + lane_ids
        loss = jnp.where(flat < total, loss, 0.0)

    # Vector accumulation only (VPU adds); the expensive cross-lane/sublane
    # reduce happens exactly once, in the wrapper, over num_parts*8*128 values.
    partial = loss.reshape(-1, _SUBLANES, _LANES).sum(axis=0)
    out_ref[...] += partial[None, :, :]


def modified_focal_loss(preds, labels, *, delta=1.0, gamma=1.0,
                        from_logits=True, tile_rows=1024, num_parts=2):
    """Pallas implementation of ModifiedFocalLoss.forward (returns scalar mean loss)."""
    assert preds.shape == labels.shape
    total = int(preds.size)

    # Tiling: large lane-dense blocks, padded (never the "whole array" fallback).
    rows = -(-total // _LANES)
    tile_rows = _round_up(min(int(tile_rows), _round_up(rows, _SUBLANES)), _SUBLANES)
    n_tiles = -(-rows // tile_rows)
    num_parts = max(1, min(int(num_parts), n_tiles))   # leading parallel axis (2 TCs on v7x)
    tiles_per_part = -(-n_tiles // num_parts)
    rows_padded = num_parts * tiles_per_part * tile_rows
    padded_total = rows_padded * _LANES
    needs_mask = padded_total != total

    def _prep(a):
        flat = jnp.reshape(a, (-1,))
        if padded_total != total:
            flat = jnp.pad(flat, (0, padded_total - total))
        return jnp.reshape(flat, (rows_padded, _LANES))

    # Stream native dtype through HBM (bf16 inputs halve HBM traffic); cast in-kernel.
    p2 = _prep(preds)
    l2 = _prep(labels)

    # Explicit VMEM budget: 2 inputs x 2 pipeline buffers x tile + headroom.
    itemsize = max(jnp.dtype(p2.dtype).itemsize, jnp.dtype(l2.dtype).itemsize)
    tile_bytes = tile_rows * _LANES * itemsize
    vmem_limit = int(min(64 * 1024 * 1024, max(4 * 1024 * 1024, 6 * tile_bytes)))

    kernel = functools.partial(
        _focal_loss_kernel,
        gamma=float(gamma),
        from_logits=bool(from_logits),
        total=total,
        tile_rows=int(tile_rows),
        tiles_per_part=int(tiles_per_part),
        needs_mask=bool(needs_mask),
    )

    partial_sums = pl.pallas_call(
        kernel,
        out_shape=jax.ShapeDtypeStruct((num_parts, _SUBLANES, _LANES), jnp.float32),
        grid=(num_parts, tiles_per_part),
        in_specs=[
            pl.BlockSpec((tile_rows, _LANES),
                         lambda p, i: (p * tiles_per_part + i, 0)),
            pl.BlockSpec((tile_rows, _LANES),
                         lambda p, i: (p * tiles_per_part + i, 0)),
        ],
        out_specs=pl.BlockSpec((1, _SUBLANES, _LANES), lambda p, i: (p, 0, 0)),
        compiler_params=pltpu.CompilerParams(
            dimension_semantics=("parallel", "arbitrary"),
            vmem_limit_bytes=vmem_limit,
        ),
    )(p2, l2)

    # delta and the 1/N of the mean folded into a single scalar, applied once.
    return jnp.sum(partial_sums, dtype=jnp.float32) * jnp.float32(delta / total)


def _reference_loss(preds, labels, *, delta=1.0, gamma=1.0, from_logits=True):
    """Pure-JAX mirror of the PyTorch ModifiedFocalLoss.forward."""
    x = preds.astype(jnp.float32)
    y = labels.astype(jnp.float32)
    p = jax.nn.sigmoid(x) if from_logits else x      # logsigmoid(x).exp()
    p_t = y * p + (1.0 - y) * (1.0 - p)
    bce = jnp.maximum(x, 0.0) - x * y + jnp.log1p(jnp.exp(-jnp.abs(x)))
    loss = delta * jnp.power(1.0 - p_t, 1.0 - gamma) * bce
    return jnp.mean(loss)


if __name__ == "__main__":
    key = jax.random.PRNGKey(0)
    k_preds, k_labels, k_p2, k_l2 = jax.random.split(key, 4)

    # NCHW, small shapes: batch=2, channels=4, spatial=16x16
    preds = jax.random.normal(k_preds, (2, 4, 16, 16), dtype=jnp.float32)
    labels = (jax.random.uniform(k_labels, (2, 4, 16, 16)) > 0.5).astype(jnp.float32)

    loss = modified_focal_loss(preds, labels, delta=1.0, gamma=1.0, from_logits=True)
    loss = jax.block_until_ready(loss)
    ref = _reference_loss(preds, labels, delta=1.0, gamma=1.0, from_logits=True)
    assert jnp.allclose(loss, ref, rtol=1e-5, atol=1e-5), (loss, ref)

    # Ragged shape (exercises the padded / masked tail path) + gamma != 1 path.
    preds_b = jax.random.normal(k_p2, (2, 3, 7, 5), dtype=jnp.float32)
    labels_b = (jax.random.uniform(k_l2, (2, 3, 7, 5)) > 0.5).astype(jnp.float32)
    loss_b = modified_focal_loss(preds_b, labels_b, delta=0.5, gamma=2.0, from_logits=True)
    loss_b = jax.block_until_ready(loss_b)
    ref_b = _reference_loss(preds_b, labels_b, delta=0.5, gamma=2.0, from_logits=True)
    assert jnp.allclose(loss_b, ref_b, rtol=1e-5, atol=1e-5), (loss_b, ref_b)

    print("KERNEL_OK")
</pallas_src>

<mosaic_0001>
module attributes {stable_mosaic.version = 11 : i64} {
  func.func @_focal_loss_kernel(%arg0: i32, %arg1: i32, %arg2: memref<16x128xf32, #tpu.memory_space<vmem>>, %arg3: memref<16x128xf32, #tpu.memory_space<vmem>>, %arg4: memref<1x8x128xf32, #tpu.memory_space<vmem>>) attributes {dimension_semantics = [#tpu.dimension_semantics<parallel>, #tpu.dimension_semantics<arbitrary>], iteration_bounds = array<i64: 1, 1>, scalar_prefetch = 0 : i64, scratch_operands = 0 : i64, tpu.core_type = #tpu.core_type<tc>, window_params = [{transform_indices = @transform_0, window_bounds = array<i64: 16, 128>}, {transform_indices = @transform_1, window_bounds = array<i64: 16, 128>}, {transform_indices = @transform_2, window_bounds = array<i64: 1, 8, 128>}]} {
    %c0_i32 = arith.constant 0 : i32
    %0 = arith.cmpi eq, %arg1, %c0_i32 : i32
    %1 = arith.extui %0 : i1 to i32
    %c0_i32_0 = arith.constant 0 : i32
    %2 = arith.cmpi ne, %1, %c0_i32_0 : i32
    scf.if %2 {
      %cst_12 = arith.constant 0.000000e+00 : f32
      %21 = vector.broadcast %cst_12 : f32 to vector<1x8x128xf32>
      %c0_13 = arith.constant 0 : index
      %c0_14 = arith.constant 0 : index
      %c0_15 = arith.constant 0 : index
      %22 = vector.load %arg4[%c0_13, %c0_14, %c0_15] : memref<1x8x128xf32, #tpu.memory_space<vmem>>, vector<1x8x128xf32>
      tpu.vector_store %arg4[%c0_13, %c0_14, %c0_15], %21 {strides = array<i32>} : memref<1x8x128xf32, #tpu.memory_space<vmem>>, vector<1x8x128xf32>,
    } else {
    }
    %c0 = arith.constant 0 : index
    %c0_1 = arith.constant 0 : index
    %3 = vector.load %arg2[%c0, %c0_1] : memref<16x128xf32, #tpu.memory_space<vmem>>, vector<16x128xf32>
    %c0_2 = arith.constant 0 : index
    %c0_3 = arith.constant 0 : index
    %4 = vector.load %arg3[%c0_2, %c0_3] : memref<16x128xf32, #tpu.memory_space<vmem>>, vector<16x128xf32>
    %5 = math.absf %3 : vector<16x128xf32>
    %cst = arith.constant 0.000000e+00 : f32
    %6 = vector.broadcast %cst : f32 to vector<16x128xf32>
    %7 = arith.subf %6, %5 : vector<16x128xf32>
    %8 = math.exp %7 : vector<16x128xf32>
    %9 = math.log1p %8 : vector<16x128xf32>
    %cst_4 = arith.constant 0.000000e+00 : f32
    %10 = vector.broadcast %cst_4 : f32 to vector<16x128xf32>
    %11 = arith.maximumf %3, %10 : vector<16x128xf32>
    %12 = arith.mulf %3, %4 : vector<16x128xf32>
    %13 = arith.subf %11, %12 : vector<16x128xf32>
    %14 = arith.addf %13, %9 : vector<16x128xf32>
    %15 = vector.shape_cast %14 : vector<16x128xf32> to vector<2x8x128xf32>
    %cst_5 = arith.constant dense<0.000000e+00> : vector<8x128xf32>
    %16 = vector.multi_reduction <add>, %15, %cst_5 [0] : vector<2x8x128xf32> to vector<8x128xf32>
    %c0_6 = arith.constant 0 : index
    %c0_7 = arith.constant 0 : index
    %c0_8 = arith.constant 0 : index
    %17 = vector.load %arg4[%c0_6, %c0_7, %c0_8] : memref<1x8x128xf32, #tpu.memory_space<vmem>>, vector<1x8x128xf32>
    %18 = vector.shape_cast %16 : vector<8x128xf32> to vector<1x8x128xf32>
    %19 = arith.addf %17, %18 : vector<1x8x128xf32>
    %c0_9 = arith.constant 0 : index
    %c0_10 = arith.constant 0 : index
    %c0_11 = arith.constant 0 : index
    %20 = vector.load %arg4[%c0_9, %c0_10, %c0_11] : memref<1x8x128xf32, #tpu.memory_space<vmem>>, vector<1x8x128xf32>
    tpu.vector_store %arg4[%c0_9, %c0_10, %c0_11], %19 {strides = array<i32>} : memref<1x8x128xf32, #tpu.memory_space<vmem>>, vector<1x8x128xf32>,
    return
  }
  func.func @transform_0(%arg0: i32, %arg1: i32) -> (i32, i32) {
    %c1_i32 = arith.constant 1 : i32
    %0 = arith.muli %arg0, %c1_i32 : i32
    %1 = arith.addi %0, %arg1 : i32
    %c0_i32 = arith.constant 0 : i32
    %c0_i32_0 = arith.constant 0 : i32
    return %1, %c0_i32 : i32, i32
  }
  func.func @transform_1(%arg0: i32, %arg1: i32) -> (i32, i32) {
    %c1_i32 = arith.constant 1 : i32
    %0 = arith.muli %arg0, %c1_i32 : i32
    %1 = arith.addi %0, %arg1 : i32
    %c0_i32 = arith.constant 0 : i32
    %c0_i32_0 = arith.constant 0 : i32
    return %1, %c0_i32 : i32, i32
  }
  func.func @transform_2(%arg0: i32, %arg1: i32) -> (i32, i32, i32) {
    %c0_i32 = arith.constant 0 : i32
    %c0_i32_0 = arith.constant 0 : i32
    %c0_i32_1 = arith.constant 0 : i32
    return %arg0, %c0_i32, %c0_i32_0 : i32, i32, i32
  }
}

</mosaic_0001>

<llo_original>
// kernel: tpu_custom_call.1
$region0: #{tpu_custom_call.1}
  #allocation0 [shape = 'u32[]', space=smem, size = 0x4, offset = 0x4, fixed_abs, tag = 'smem constant byte address 0x4 - core index']
  #allocation1 [shape = 'u32[144,128]{1,0:T(1,128)}', space=vmem, size = 0x12000, scoped, tag = 'internal scratch']
  %s0 = inlined_call_operand.hbm [shape: f32[16,128], index: 0, kind: input, shape index: {}]
  %s1 = inlined_call_operand.hbm [shape: f32[16,128], index: 1, kind: input, shape index: {}]
  %s2 = inlined_call_operand.hbm [shape: f32[1,8,128], index: 2, kind: output, shape index: {}]
  %s3 = sld [smem:[#allocation0]]
  $region30: #{tpu_custom_call.1} parent=0
    _
  %s5 = ssub.s32 1, %s3
  %s6 = scalar_select 0, %s5, %s3
  $region1: #{tpu_custom_call.1} parent=0
    #allocation2 [shape = 'u8[8192]{0}', space=vmem, size = 0x2000, scoped, tag = 'input window, operand 0, single buffered']
    #allocation3 [shape = 's32[1]{0}', space=sflag, size = 0x4, scoped, tag = 'scoped memory for tpu_custom_call.1']
    #allocation4 [shape = 's32[1]{0}', space=sflag, size = 0x4, scoped, tag = 'scoped memory for tpu_custom_call.1']
    #allocation5 [shape = 'u8[8192]{0}', space=vmem, size = 0x2000, scoped, tag = 'input window, operand 1, single buffered']
    #allocation6 [shape = 's32[1]{0}', space=sflag, size = 0x4, scoped, tag = 'scoped memory for tpu_custom_call.1']
    #allocation7 [shape = 'u8[4096]{0}', space=vmem, size = 0x1000, scoped, tag = 'output window, operand 0, single buffered']
    %7 = vsyncpa [#allocation3], 0
    %8 = vsyncpa [#allocation6], 0
    %9 = vsyncpa [#allocation4], 0
    // Predicated region
    $region2: #{tpu_custom_call.1} parent=1 // pred_check
      _
    $region3: #{tpu_custom_call.1} parent=1 // pred_check_branch
      %11 = sbr.rel (0) target = $region5
    $region4: #{tpu_custom_call.1} parent=1 // pred_region
      %s12 = sadd.s32 0, 0
      %s13 = smul.u32 2, %s12
      %s15 = ssub.s32 256, 256
      %16 = vsyncadd [#allocation3], %s15
      %s17 = smul.addr %s13, 128
      %s18 = scalar_lea.hbm %s0, %s17
      %s19 = sshll.u32 [#allocation2], 4
      %s20 = int_to_ptr.vmem [resolvable:$true] %s19
      %25 = dma.hbm_to_vmem [thread:$0]  %s18, 256, %s20, [#allocation3], 128, 128, 8
    $region5: #{tpu_custom_call.1} parent=1 // pred_fallthru
      _
    // Predicated region
    $region6: #{tpu_custom_call.1} parent=1 // pred_check
      _
    $region7: #{tpu_custom_call.1} parent=1 // pred_check_branch
      %27 = sbr.rel (0) target = $region9
    $region8: #{tpu_custom_call.1} parent=1 // pred_region
      %s28 = sadd.s32 0, 0
      %s29 = smul.u32 2, %s28
      %s31 = ssub.s32 256, 256
      %32 = vsyncadd [#allocation6], %s31
      %s33 = smul.addr %s29, 128
      %s34 = scalar_lea.hbm %s1, %s33
      %s35 = sshll.u32 [#allocation5], 4
      %s36 = int_to_ptr.vmem [resolvable:$true] %s35
      %41 = dma.hbm_to_vmem [thread:$0]  %s34, 256, %s36, [#allocation6], 128, 128, 8
    $region9: #{tpu_custom_call.1} parent=1 // pred_fallthru
      _
    // Predicated region
    $region10: #{tpu_custom_call.1} parent=1 // pred_check
      _
    $region11: #{tpu_custom_call.1} parent=1 // pred_check_branch
      %43 = sbr.rel (0) target = $region13
    $region12: #{tpu_custom_call.1} parent=1 // pred_region
      %44 = dma.done [#allocation3], 256
    $region13: #{tpu_custom_call.1} parent=1 // pred_fallthru
      _
    // Predicated region
    $region14: #{tpu_custom_call.1} parent=1 // pred_check
      _
    $region15: #{tpu_custom_call.1} parent=1 // pred_check_branch
      %46 = sbr.rel (0) target = $region17
    $region16: #{tpu_custom_call.1} parent=1 // pred_region
      %47 = dma.done [#allocation6], 256
    $region17: #{tpu_custom_call.1} parent=1 // pred_fallthru
      _
    %s48 = sadd.s32 0, 0
    %s49 = smul.u32 2, %s48
    %s50 = sadd.s32 0, 0
    %s51 = smul.u32 2, %s50
    %p52 = scmp.eq.s32.totalorder 0, 0
    // Predicated region
    $region18: #{tpu_custom_call.1} parent=1 // pred_check
      %p53 = pneg %p52
    $region19: #{tpu_custom_call.1} parent=1 // pred_check_branch
      %55 = sbr.rel (%p53) target = $region21
    $region20: #{tpu_custom_call.1} parent=1 // pred_region
      %56 = vst [vmem:[#allocation7] sm:$0xff] 0.0
    $region21: #{tpu_custom_call.1} parent=1 // pred_fallthru
      _
    %v57 = vld [vmem:[#allocation2] sm:$0xff]
    %v58 = vld [vmem:[#allocation2 + $0x8] sm:$0xff]
    %v59 = vld [vmem:[#allocation5] sm:$0xff]
    %v60 = vld [vmem:[#allocation5 + $0x8] sm:$0xff]
    %v61 = vand.u32 2147483647, %v57
    %v62 = vand.u32 2147483647, %v58
    %v63 = vsub.f32 0.0, %v61
    %v64 = vsub.f32 0.0, %v62
    %v65 = vmul.f32 %v63, 1.442695
    %v66 = vpow.pop %v65
    %v67 = vmul.f32 %v64, 1.442695
    %v68 = vpow.pop %v67
    %v69 = vadd.f32 %v66, 1.0
    %v70 = vlog2.pop %v69
    %v71 = vmul.f32 %v70, 0.6931472
    %v72 = vmul.f32 -0.5, %v66
    %v73 = vadd.f32 %v72, 1.0
    %v74 = vmul.f32 %v73, %v66
    %v75 = vand.u32 2147483647, %v66
    %vm76 = vcmp.lt.f32.partialorder %v75, 0.0004427343
    %v77 = vsel %vm76, %v74, %v71
    %v78 = vadd.f32 %v68, 1.0
    %v79 = vlog2.pop %v78
    %v80 = vmul.f32 %v79, 0.6931472
    %v81 = vmul.f32 -0.5, %v68
    %v82 = vadd.f32 %v81, 1.0
    %v83 = vmul.f32 %v82, %v68
    %v84 = vand.u32 2147483647, %v68
    %vm85 = vcmp.lt.f32.partialorder %v84, 0.0004427343
    %v86 = vsel %vm85, %v83, %v80
    %v87 = vmax.f32 %v57, 0.0
    %v88 = vmax.f32 %v58, 0.0
    %v89 = vmul.f32 %v57, %v59
    %v90 = vmul.f32 %v58, %v60
    %v91 = vsub.f32 %v87, %v89
    %v92 = vsub.f32 %v88, %v90
    %v93 = vadd.f32 %v91, %v77
    %v94 = vadd.f32 %v92, %v86
    %v95 = vadd.f32 %v93, %v94
    %v96 = vld [vmem:[#allocation7] sm:$0xff]
    %v97 = vadd.f32 %v96, %v95
    %98 = vst [vmem:[#allocation7] sm:$0xff] %v97
    // Predicated region
    $region22: #{tpu_custom_call.1} parent=1 // pred_check
      _
    $region23: #{tpu_custom_call.1} parent=1 // pred_check_branch
      %100 = sbr.rel (0) target = $region25
    $region24: #{tpu_custom_call.1} parent=1 // pred_region
      %s102 = ssub.s32 128, 128
      %103 = vsyncadd [#allocation4], %s102
      %s105 = sshll.u32 [#allocation7], 4
      %s106 = int_to_ptr.vmem [resolvable:$true] %s105
      %108 = dma.vmem_to_hbm [thread:$0]  %s106, 128, %s2, [#allocation4]
    $region25: #{tpu_custom_call.1} parent=1 // pred_fallthru
      _
    // Predicated region
    $region26: #{tpu_custom_call.1} parent=1 // pred_check
      _
    $region27: #{tpu_custom_call.1} parent=1 // pred_check_branch
      %110 = sbr.rel (0) target = $region29
    $region28: #{tpu_custom_call.1} parent=1 // pred_region
      %111 = dma.done [#allocation4], 128
    $region29: #{tpu_custom_call.1} parent=1 // pred_fallthru
      _
    %112 = vsyncpa [#allocation3], 1
    %113 = vsyncpa [#allocation6], 1
    %114 = vsyncpa [#allocation4], 1

</llo_original>
